<compile_context>
chip_gen: v6e
topology: v6e:2x2x1
jax: 0.10.0
libtpu: 0.0.40
codegen_flags: <defaults>
</compile_context>

<pallas_src>
import math

import jax
import jax.numpy as jnp
from jax.experimental import pallas as pl
from jax.experimental.pallas import tpu as pltpu

D_MODEL = 22
MAX_LEN = 1000


def make_positional_encoding(d_model: int = D_MODEL, max_len: int = MAX_LEN):
    """Deterministic sinusoidal PE, identical to the PyTorch buffer `pe`."""
    position = jnp.arange(0, max_len, dtype=jnp.float32)[:, None]            # (L, 1)
    div_term = jnp.exp(
        jnp.arange(0, d_model, 2, dtype=jnp.float32) * -(math.log(10000.0) / d_model)
    )                                                                         # (D/2,)
    angles = position * div_term                                              # (L, D/2)
    sin = jnp.sin(angles)
    cos = jnp.cos(angles)
    # interleave: pe[:, 0::2] = sin, pe[:, 1::2] = cos  (d_model is even)
    pe = jnp.stack([sin, cos], axis=-1).reshape(max_len, d_model)             # (L, D)
    return pe


# ---------------------------------------------------------------------------
# Kernels
# ---------------------------------------------------------------------------
def _add_pe_transpose_kernel(x_ref, pe_ref, o_ref):
    # x_ref : (B, D, S_TILE)  activation tile, native layout (seq on lanes)
    # pe_ref: (D, S_TILE)     positional-encoding tile (from transposed buffer)
    # o_ref : (B, S_TILE, D)  output tile in the module's (B, seq, D) layout
    pe = pe_ref[...]
    for b in range(x_ref.shape[0]):              # B is a small static int
        y = x_ref[b] + pe                        # lane-dense VALU add
        o_ref[b] = jnp.transpose(y, (1, 0))      # 2-D XLU transpose -> (S_TILE, D)


def _add_pe_native_kernel(x_ref, pe_ref, o_ref):
    # Fallback path: identical lane-dense add; output kept in native (B, D, S)
    # layout (unmasked full-lane stores); final permute done by one XLA op.
    o_ref[...] = x_ref[...] + pe_ref[...]


def _build_pallas_call(B, D, S, s_tile, dtype, transpose_in_kernel):
    n_s = pl.cdiv(S, s_tile)
    grid = (n_s,)                                # batch folded into the block

    x_spec = pl.BlockSpec((B, D, s_tile), lambda si: (0, 0, si))
    pe_spec = pl.BlockSpec((D, s_tile), lambda si: (0, si))

    if transpose_in_kernel:
        kernel = _add_pe_transpose_kernel
        out_shape = jax.ShapeDtypeStruct((B, S, D), dtype)
        out_spec = pl.BlockSpec((B, s_tile, D), lambda si: (0, si, 0))
    else:
        kernel = _add_pe_native_kernel
        out_shape = jax.ShapeDtypeStruct((B, D, S), dtype)
        out_spec = pl.BlockSpec((B, D, s_tile), lambda si: (0, 0, si))

    return pl.pallas_call(
        kernel,
        out_shape=out_shape,
        grid_spec=pltpu.PrefetchScalarGridSpec(
            num_scalar_prefetch=0,
            grid=grid,
            in_specs=[x_spec, pe_spec],
            out_specs=out_spec,
        ),
        compiler_params=pltpu.CompilerParams(
            dimension_semantics=("parallel",),
        ),
    )


# ---------------------------------------------------------------------------
# One-time static capability probe (replaces the per-call try/except)
# ---------------------------------------------------------------------------
_TRANSPOSE_KERNEL_OK = None


def _transpose_kernel_supported():
    """Can this Mosaic build lower the in-kernel (D, st)->(st, D) transpose?

    AOT-compiled once on a tiny shape; result cached so the per-call path is
    selected statically (no exception handling hiding under jit tracing).
    """
    global _TRANSPOSE_KERNEL_OK
    if _TRANSPOSE_KERNEL_OK is None:
        try:
            call = _build_pallas_call(1, D_MODEL, 128, 128, jnp.float32, True)
            x = jax.ShapeDtypeStruct((1, D_MODEL, 128), jnp.float32)
            p = jax.ShapeDtypeStruct((D_MODEL, 128), jnp.float32)
            jax.jit(call).lower(x, p).compile()   # runs the Mosaic compile now
            _TRANSPOSE_KERNEL_OK = True
        except Exception:
            _TRANSPOSE_KERNEL_OK = False
    return _TRANSPOSE_KERNEL_OK


# ---------------------------------------------------------------------------
# Forward wrapper (matches torch Embedding.forward semantics)
# ---------------------------------------------------------------------------
def embedding_forward(x, pe_t, *, s_tile=512, transpose_in_kernel=None):
    """x: (B, 1, d_model, seq) float32; pe_t: (d_model, max_len) PE buffer.

    Returns the same result as the torch module (permute + PE add + squeeze).
    """
    B, C, D, S = x.shape
    assert C == 1, "module expects a unit channel dim"
    assert D == pe_t.shape[0], "d_model mismatch with pe buffer"
    assert S <= pe_t.shape[1], "sequence length exceeds max_len"
    assert s_tile % 128 == 0

    if transpose_in_kernel is None:
        transpose_in_kernel = _transpose_kernel_supported()

    x_nat = x.reshape(B, D, S)          # drop unit channel: metadata only, no copy
    pe_s = pe_t[:, :S]                  # static slice of the hoisted buffer (<=88 KiB)

    # Sequence tiling: keep >=2 parallel grid points for long sequences
    # (v7x has 2 TensorCores) while capping the per-step VMEM footprint
    # (transposed out tile pads 22 -> 128 lanes: ~B*st*128*4 B per buffer).
    st = s_tile
    max_bst = 8192                      # B*st cap -> <=4 MiB padded out tile / buffer
    if B * st > max_bst:
        st = max(128, (max_bst // max(B, 1)) // 128 * 128)
    st = S if S <= st else st           # full-S block, or 128-multiple chunks

    call = _build_pallas_call(B, D, S, st, x.dtype, transpose_in_kernel)
    out = call(x_nat, pe_s)
    if not transpose_in_kernel:
        # TODO(synk): if the downstream consumer can take (B, D, S) directly,
        # drop this permute and fuse it into the consumer instead.
        out = jnp.transpose(out, (0, 2, 1))

    # torch .squeeze(): drop ALL size-1 dims (e.g. batch if B == 1).
    return jnp.squeeze(out)


if __name__ == "__main__":
    pe = make_positional_encoding()               # (MAX_LEN, D)  torch-layout buffer
    pe_t = jnp.transpose(pe, (1, 0))              # (D, MAX_LEN)  hoisted out of forward

    # Small shape consistent with the module (batch=2, seq=8, d_model=22).
    key = jax.random.PRNGKey(0)
    B, C, D, S = 2, 1, D_MODEL, 8
    x = jax.random.normal(key, (B, C, D, S), dtype=jnp.float32)

    y = embedding_forward(x, pe_t)
    jax.block_until_ready(y)

    ref = jnp.squeeze(jnp.transpose(x, (0, 1, 3, 2)) + pe[None, None, :S, :])
    assert y.shape == (B, S, D), y.shape
    assert jnp.allclose(y, ref, atol=1e-6), "mismatch vs reference (small)"

    # Larger shape: exercises seq tiling (two lane tiles incl. a partial
    # tail), batch folded into the block, and a 2-point parallel grid.
    B2, S2 = 2, 1000
    x2 = jax.random.normal(jax.random.PRNGKey(1), (B2, 1, D_MODEL, S2),
                           dtype=jnp.float32)
    y2 = embedding_forward(x2, pe_t)
    jax.block_until_ready(y2)

    ref2 = jnp.squeeze(jnp.transpose(x2, (0, 1, 3, 2)) + pe[None, None, :S2, :])
    assert y2.shape == (B2, S2, D_MODEL), y2.shape
    assert jnp.allclose(y2, ref2, atol=1e-6), "mismatch vs reference (large)"

    print("KERNEL_OK")
</pallas_src>

<mosaic_0001>
module attributes {stable_mosaic.version = 11 : i64} {
  func.func @_add_pe_native_kernel(%arg0: i32, %arg1: memref<2x22x8xf32, #tpu.memory_space<vmem>>, %arg2: memref<22x8xf32, #tpu.memory_space<vmem>>, %arg3: memref<2x22x8xf32, #tpu.memory_space<vmem>>) attributes {dimension_semantics = [#tpu.dimension_semantics<parallel>], iteration_bounds = array<i64: 1>, scalar_prefetch = 0 : i64, scratch_operands = 0 : i64, tpu.core_type = #tpu.core_type<tc>, window_params = [{transform_indices = @transform_0, window_bounds = array<i64: 2, 22, 8>}, {transform_indices = @transform_1, window_bounds = array<i64: 22, 8>}, {transform_indices = @transform_2, window_bounds = array<i64: 2, 22, 8>}]} {
    %c0 = arith.constant 0 : index
    %c0_0 = arith.constant 0 : index
    %c0_1 = arith.constant 0 : index
    %0 = vector.load %arg1[%c0, %c0_0, %c0_1] : memref<2x22x8xf32, #tpu.memory_space<vmem>>, vector<2x22x8xf32>
    %c0_2 = arith.constant 0 : index
    %c0_3 = arith.constant 0 : index
    %1 = vector.load %arg2[%c0_2, %c0_3] : memref<22x8xf32, #tpu.memory_space<vmem>>, vector<22x8xf32>
    %2 = vector.shape_cast %1 : vector<22x8xf32> to vector<1x22x8xf32>
    %3 = vector.broadcast %2 : vector<1x22x8xf32> to vector<2x22x8xf32>
    %4 = arith.addf %0, %3 : vector<2x22x8xf32>
    %c0_4 = arith.constant 0 : index
    %c0_5 = arith.constant 0 : index
    %c0_6 = arith.constant 0 : index
    %5 = vector.load %arg3[%c0_4, %c0_5, %c0_6] : memref<2x22x8xf32, #tpu.memory_space<vmem>>, vector<2x22x8xf32>
    tpu.vector_store %arg3[%c0_4, %c0_5, %c0_6], %4 {strides = array<i32>} : memref<2x22x8xf32, #tpu.memory_space<vmem>>, vector<2x22x8xf32>,
    return
  }
  func.func @transform_0(%arg0: i32) -> (i32, i32, i32) {
    %c0_i32 = arith.constant 0 : i32
    %c0_i32_0 = arith.constant 0 : i32
    %c0_i32_1 = arith.constant 0 : i32
    return %c0_i32, %c0_i32_0, %arg0 : i32, i32, i32
  }
  func.func @transform_1(%arg0: i32) -> (i32, i32) {
    %c0_i32 = arith.constant 0 : i32
    %c0_i32_0 = arith.constant 0 : i32
    return %c0_i32, %arg0 : i32, i32
  }
  func.func @transform_2(%arg0: i32) -> (i32, i32, i32) {
    %c0_i32 = arith.constant 0 : i32
    %c0_i32_0 = arith.constant 0 : i32
    %c0_i32_1 = arith.constant 0 : i32
    return %c0_i32, %c0_i32_0, %arg0 : i32, i32, i32
  }
}

</mosaic_0001>

<llo_original>
// kernel: tpu_custom_call.1
$region0: #{tpu_custom_call.1}
  #allocation0 [shape = 'u32[]', space=smem, size = 0x4, offset = 0x4, fixed_abs, tag = 'smem constant byte address 0x4 - core index']
  #allocation1 [shape = 'u32[144,128]{1,0:T(1,128)}', space=vmem, size = 0x12000, scoped, tag = 'internal scratch']
  %s0 = inlined_call_operand.vmem [shape: f32[2,22,8], index: 0, kind: input, shape index: {}]
  %s1 = inlined_call_operand.vmem [shape: f32[22,8], index: 1, kind: input, shape index: {}]
  %s2 = inlined_call_operand.vmem [shape: f32[2,22,8], index: 2, kind: output, shape index: {}]
  %s3 = sld [smem:[#allocation0]]
  $region18: #{tpu_custom_call.1} parent=0
    _
  %s5 = ssub.s32 1, %s3
  %s6 = scalar_select 0, %s5, %s3
  // Predicated region
  $region2: #{tpu_custom_call.1} parent=0 // pred_check
    _
  $region3: #{tpu_custom_call.1} parent=0 // pred_check_branch
    %8 = sbr.rel (0) target = $region5
  $region4: #{tpu_custom_call.1} parent=0 // pred_region
    _
  $region5: #{tpu_custom_call.1} parent=0 // pred_fallthru
    _
  // Predicated region
  $region6: #{tpu_custom_call.1} parent=0 // pred_check
    _
  $region7: #{tpu_custom_call.1} parent=0 // pred_check_branch
    %10 = sbr.rel (0) target = $region9
  $region8: #{tpu_custom_call.1} parent=0 // pred_region
    _
  $region9: #{tpu_custom_call.1} parent=0 // pred_fallthru
    _
  %v11 = vld [vmem:[%s0] sm:$0xff]
  %v12 = vld [vmem:[%s0 + $0x8] sm:$0xff]
  %v13 = vld [vmem:[%s0 + $0x10] sm:$0x3f]
  %v14 = vld [vmem:[%s0 + $0x18] sm:$0xff]
  %v15 = vld [vmem:[%s0 + $0x20] sm:$0xff]
  %v16 = vld [vmem:[%s0 + $0x28] sm:$0x3f]
  %v17 = vld [vmem:[%s1] sm:$0xff]
  %v18 = vld [vmem:[%s1 + $0x8] sm:$0xff]
  %v19 = vld [vmem:[%s1 + $0x10] sm:$0x3f]
  %v20 = vadd.f32 %v11, %v17
  %v21 = vadd.f32 %v12, %v18
  %v22 = vadd.f32 %v13, %v19
  %v23 = vadd.f32 %v14, %v17
  %v24 = vadd.f32 %v15, %v18
  %v25 = vadd.f32 %v16, %v19
  %vm26 = vcmask 64512
  %27 = vst.msk [vmem:[%s2] sm:$0xff] %vm26, %v20
  %28 = vst.msk [vmem:[%s2 + $0x8] sm:$0xff] %vm26, %v21
  %vm29 = vcmask 62464
  %30 = vst.msk [vmem:[%s2 + $0x10] sm:$0x3f] %vm29, %v22
  %31 = vst.msk [vmem:[%s2 + $0x18] sm:$0xff] %vm26, %v23
  %32 = vst.msk [vmem:[%s2 + $0x20] sm:$0xff] %vm26, %v24
  %33 = vst.msk [vmem:[%s2 + $0x28] sm:$0x3f] %vm29, %v25
  // Predicated region
  $region10: #{tpu_custom_call.1} parent=0 // pred_check
    _
  $region11: #{tpu_custom_call.1} parent=0 // pred_check_branch
    %35 = sbr.rel (0) target = $region13
  $region12: #{tpu_custom_call.1} parent=0 // pred_region
    _
  $region13: #{tpu_custom_call.1} parent=0 // pred_fallthru
    _
  // Predicated region
  $region14: #{tpu_custom_call.1} parent=0 // pred_check
    _
  $region15: #{tpu_custom_call.1} parent=0 // pred_check_branch
    %37 = sbr.rel (0) target = $region17
  $region16: #{tpu_custom_call.1} parent=0 // pred_region
    _
  $region17: #{tpu_custom_call.1} parent=0 // pred_fallthru
    _

</llo_original>
